<compile_context>
chip_gen: v7x
topology: tpu7x:2x2x1
jax: 0.10.0
libtpu: 0.0.40
codegen_flags: <defaults>
</compile_context>

<pallas_src>
import jax
import jax.numpy as jnp
from jax.experimental import pallas as pl
from jax.experimental.pallas import tpu as pltpu

NUM_NODES = 10
NUM_EDGES = 15
IN_CHANNELS = 5
HIDDEN_CHANNELS = 10
NUM_CLASSES = 3
NUM_GRAPHS = 2
E_TOTAL = NUM_EDGES + NUM_NODES            # edges after add_self_loops
LANE = 128                                 # lane-padded fc output width


def _gat_classifier_kernel(x_ref, idx_ref, wqkv_ref, wfc_ref, out_ref):
    """One graph instance per grid step.

    x_ref   : (N, C+1)    bf16  [x | 1]   (ones column folds the q/v biases)
    idx_ref : (2E, 2)     i32   col0 = [dst ; src], col1[:N] = graph id per node
    wqkv_ref: (C+1, 3H)   bf16  [Wq^T | Wk*mask | Wv^T ; bias row]
    wfc_ref : (H+1, 128)  f32   rows 0..H-1 = fc.weight^T (lane padded), row H = fc bias
    out_ref : (G, 128)    f32   graph logits, lanes >= K are zero pad
    """
    N, _ = x_ref.shape
    two_e, _ = idx_ref.shape
    E = two_e // 2
    H = (wfc_ref.shape[0]) - 1
    G, _ = out_ref.shape

    # ---- fused q/k/v projection: [x|1] @ [W|b]  (bf16 in, f32 acc) ----------
    qkv = jnp.dot(x_ref[...], wqkv_ref[...],
                  preferred_element_type=jnp.float32)                  # (N, 3H)

    # ---- single fused edge gather: rows [0:E) select dst, [E:2E) select src -
    node_iota = jax.lax.broadcasted_iota(jnp.int32, (two_e, N), 1)
    sel = (node_iota == idx_ref[:, 0:1]).astype(jnp.float32)           # (2E, N)
    gathered = jnp.dot(sel, qkv, preferred_element_type=jnp.float32)   # (2E, 3H)
    q_i = gathered[0:E, 0:H]
    k_j = gathered[E:2 * E, H:2 * H]
    v_j = gathered[E:2 * E, 2 * H:3 * H]

    # ---- attention logits + GLOBAL softmax over all edges (dim=0, as in ref)
    scale = 1.0 / jnp.sqrt(jnp.float32(H))
    logits = jnp.sum(q_i * k_j, axis=-1, keepdims=True) * scale        # (E, 1)
    m = jnp.max(logits, axis=0, keepdims=True)
    e = jnp.exp(logits - m)
    alpha = e * pl.reciprocal(jnp.sum(e, axis=0, keepdims=True), approx=True)

    # ---- messages + scatter-add into destination nodes (contract edge axis) -
    msg = v_j * alpha                                                   # (E, H)
    s_dst = sel[0:E, :]                                                 # (E, N)
    agg = jax.lax.dot_general(s_dst, msg, (((0,), (0,)), ((), ())),
                              preferred_element_type=jnp.float32)       # (N, H)

    # ---- relu -> exact global mean pool (normalization folded into the mask)
    h = jnp.maximum(agg, 0.0)
    graph_iota = jax.lax.broadcasted_iota(jnp.int32, (N, G), 1)
    s_b = (graph_iota == idx_ref[0:N, 1:2]).astype(jnp.float32)         # (N, G)
    counts = jnp.sum(s_b, axis=0, keepdims=True)                        # (1, G)
    # TODO(synk): empty graph segments pool to the zero vector (matches
    # torch_geometric's scatter-mean behaviour for absent graph ids).
    s_b = s_b / jnp.maximum(counts, 1.0)        # exact f32 divide, no approx
    pooled = jax.lax.dot_general(s_b, h, (((0,), (0,)), ((), ())),
                                 preferred_element_type=jnp.float32)    # (G, H)

    # ---- final linear + bias, lane-dense (G, 128) store ----------------------
    out_ref[...] = (jnp.dot(pooled, wfc_ref[0:H, :],
                            preferred_element_type=jnp.float32)
                    + wfc_ref[H:H + 1, :])


def gat_graph_classifier(x, edge_index, batch, params):
    """Forward pass.

    Batched: x (B,N,C) f32, edge_index (B,2,E) int, batch (B,N) int.
    Unbatched (no leading B) inputs are also accepted.
    """
    squeeze = x.ndim == 2
    if squeeze:
        x, edge_index, batch = x[None], edge_index[None], batch[None]

    B, N, C = x.shape
    E = edge_index.shape[-1] + N            # after self loops

    # ---- tiny int / layout glue done once in XLA, outside the kernel --------
    loops = jnp.broadcast_to(jnp.arange(N, dtype=jnp.int32), (B, N))
    ei = jnp.concatenate(
        [edge_index.astype(jnp.int32), jnp.stack([loops, loops], axis=1)],
        axis=-1)                                                        # (B, 2, E)
    src, dst = ei[:, 0, :], ei[:, 1, :]
    sel_idx = jnp.concatenate([dst, src], axis=-1)                      # (B, 2E)
    batch_pad = jnp.pad(batch.astype(jnp.int32), ((0, 0), (0, 2 * E - N)))
    idx = jnp.stack([sel_idx, batch_pad], axis=-1)                      # (B, 2E, 2)
    x_ext = jnp.concatenate(
        [x, jnp.ones((B, N, 1), x.dtype)], axis=-1).astype(jnp.bfloat16)  # (B, N, C+1)

    out = pl.pallas_call(
        _gat_classifier_kernel,
        out_shape=jax.ShapeDtypeStruct((B, NUM_GRAPHS, LANE), jnp.float32),
        grid=(B,),
        in_specs=[
            pl.BlockSpec((None, N, C + 1), lambda b: (b, 0, 0)),
            pl.BlockSpec((None, 2 * E, 2), lambda b: (b, 0, 0)),
            pl.BlockSpec((C + 1, 3 * HIDDEN_CHANNELS), lambda b: (0, 0)),
            pl.BlockSpec((HIDDEN_CHANNELS + 1, LANE), lambda b: (0, 0)),
        ],
        out_specs=pl.BlockSpec((None, NUM_GRAPHS, LANE), lambda b: (b, 0, 0)),
        compiler_params=pltpu.CompilerParams(
            dimension_semantics=("parallel",)),
    )(x_ext, idx, params["w_qkv_ext"], params["wfc_blk"])

    logits = out[..., :NUM_CLASSES]
    return logits[0] if squeeze else logits


def _xavier_uniform(key, shape, fan_in, fan_out):
    bound = jnp.sqrt(6.0 / (fan_in + fan_out))
    return jax.random.uniform(key, shape, jnp.float32, -bound, bound)


def init_params(key):
    ks = jax.random.split(key, 7)
    c, h, k = IN_CHANNELS, HIDDEN_CHANNELS, NUM_CLASSES
    lin_b = 1.0 / jnp.sqrt(jnp.float32(c))
    fc_b = 1.0 / jnp.sqrt(jnp.float32(h))

    # nn.Linear weights are (out, in); the kernel consumes the transposes.
    wq = _xavier_uniform(ks[0], (h, c), c, h)                    # W_query.weight
    bq = jax.random.uniform(ks[1], (h,), jnp.float32, -lin_b, lin_b)
    wv = _xavier_uniform(ks[2], (h, c), c, h)                    # W_value.weight
    bv = jax.random.uniform(ks[3], (h,), jnp.float32, -lin_b, lin_b)

    wk = _xavier_uniform(ks[4], (c, h), c, h)                    # W_key (in, out)
    mask = jnp.ones((c, h), jnp.float32).at[:, 0].set(0.0)
    wk = wk * mask                                               # masked key projection

    wfc = _xavier_uniform(ks[5], (k, h), h, k)                   # fc.weight
    bfc = jax.random.uniform(ks[6], (k,), jnp.float32, -fc_b, fc_b)

    # fused qkv weight (C+1, 3H) with q/v biases folded as an extra input row,
    # pre-cast to bf16 so the kernel does zero weight casts.
    w_qkv = jnp.concatenate([wq.T, wk, wv.T], axis=1)                      # (C, 3H)
    b_qkv = jnp.concatenate([bq, jnp.zeros((h,), jnp.float32), bv])[None]  # (1, 3H)
    w_qkv_ext = jnp.concatenate([w_qkv, b_qkv], axis=0).astype(jnp.bfloat16)

    # fc weight^T padded to 128 lanes (lane-dense store), bias as the final row
    wfc_blk = jnp.zeros((h + 1, LANE), jnp.float32)
    wfc_blk = wfc_blk.at[:h, :k].set(wfc.T)
    wfc_blk = wfc_blk.at[h, :k].set(bfc)

    return {"w_qkv_ext": w_qkv_ext, "wfc_blk": wfc_blk}


if __name__ == "__main__":
    key = jax.random.PRNGKey(0)
    k_x, k_ei, k_b, k_p = jax.random.split(key, 4)

    B = 4   # independent graph-batches processed in one pallas_call via the grid
    x = jax.random.uniform(k_x, (B, NUM_NODES, IN_CHANNELS), jnp.float32)
    edge_index = jax.random.randint(k_ei, (B, 2, NUM_EDGES), 0, NUM_NODES,
                                    dtype=jnp.int32)
    batch = jax.random.randint(k_b, (B, NUM_NODES), 0, NUM_GRAPHS, dtype=jnp.int32)
    params = init_params(k_p)

    out = jax.jit(gat_graph_classifier)(x, edge_index, batch, params)
    jax.block_until_ready(out)
    assert out.shape == (B, NUM_GRAPHS, NUM_CLASSES)
    assert jnp.all(jnp.isfinite(out))
    print("KERNEL_OK")
</pallas_src>

<mosaic_0001>
module attributes {stable_mosaic.version = 11 : i64} {
  func.func @_gat_classifier_kernel(%arg0: i32, %arg1: memref<1x10x6xbf16, #tpu.memory_space<vmem>>, %arg2: memref<1x50x2xi32, #tpu.memory_space<vmem>>, %arg3: memref<6x30xbf16, #tpu.memory_space<vmem>>, %arg4: memref<11x128xf32, #tpu.memory_space<vmem>>, %arg5: memref<1x2x128xf32, #tpu.memory_space<vmem>>) attributes {dimension_semantics = [#tpu.dimension_semantics<parallel>], iteration_bounds = array<i64: 4>, scalar_prefetch = 0 : i64, scratch_operands = 0 : i64, tpu.core_type = #tpu.core_type<tc>, window_params = [{transform_indices = @transform_0, window_bounds = array<i64: 1, 10, 6>}, {transform_indices = @transform_1, window_bounds = array<i64: 1, 50, 2>}, {pipeline_mode = #tpu.pipeline_mode<synchronous>, transform_indices = @transform_2, window_bounds = array<i64: 6, 30>}, {pipeline_mode = #tpu.pipeline_mode<synchronous>, transform_indices = @transform_3, window_bounds = array<i64: 11, 128>}, {transform_indices = @transform_4, window_bounds = array<i64: 1, 2, 128>}]} {
    %c0 = arith.constant 0 : index
    %c0_0 = arith.constant 0 : index
    %c0_1 = arith.constant 0 : index
    %0 = vector.load %arg1[%c0, %c0_0, %c0_1] : memref<1x10x6xbf16, #tpu.memory_space<vmem>>, vector<1x10x6xbf16>
    %1 = vector.shape_cast %0 : vector<1x10x6xbf16> to vector<10x6xbf16>
    %c0_2 = arith.constant 0 : index
    %c0_3 = arith.constant 0 : index
    %2 = vector.load %arg3[%c0_2, %c0_3] : memref<6x30xbf16, #tpu.memory_space<vmem>>, vector<6x30xbf16>
    %cst = arith.constant dense<0.000000e+00> : vector<10x30xf32>
    %3 = tpu.matmul %1, %2, %cst {dimension_numbers = #tpu.dot_dimension_numbers<[1], [0], [0], [1], [0, 0, 1, 1], [], []>} : vector<10x6xbf16>, vector<6x30xbf16>, vector<10x30xf32> -> vector<10x30xf32>
    %4 = tpu.iota {dimensions = array<i32: 1>} : vector<50x10xi32>
    %c0_4 = arith.constant 0 : index
    %c0_5 = arith.constant 0 : index
    %c0_6 = arith.constant 0 : index
    %5 = vector.load %arg2[%c0_4, %c0_5, %c0_6] : memref<1x50x2xi32, #tpu.memory_space<vmem>>, vector<1x50x1xi32>
    %6 = vector.shape_cast %5 : vector<1x50x1xi32> to vector<50x1xi32>
    %7 = vector.broadcast %6 : vector<50x1xi32> to vector<50x10xi32>
    %8 = arith.cmpi eq, %4, %7 : vector<50x10xi32>
    %9 = arith.extui %8 : vector<50x10xi1> to vector<50x10xi32>
    %10 = arith.sitofp %9 : vector<50x10xi32> to vector<50x10xf32>
    %cst_7 = arith.constant dense<0.000000e+00> : vector<50x30xf32>
    %11 = tpu.matmul %10, %3, %cst_7 {dimension_numbers = #tpu.dot_dimension_numbers<[1], [0], [0], [1], [0, 0, 1, 1], [], []>} : vector<50x10xf32>, vector<10x30xf32>, vector<50x30xf32> -> vector<50x30xf32>
    %12 = vector.extract_strided_slice %11 {offsets = [0, 0], sizes = [25, 10], strides = [1, 1]} : vector<50x30xf32> to vector<25x10xf32>
    %13 = vector.extract_strided_slice %11 {offsets = [25, 10], sizes = [25, 10], strides = [1, 1]} : vector<50x30xf32> to vector<25x10xf32>
    %14 = vector.extract_strided_slice %11 {offsets = [25, 20], sizes = [25, 10], strides = [1, 1]} : vector<50x30xf32> to vector<25x10xf32>
    %cst_8 = arith.constant 1.000000e+01 : f32
    %15 = math.sqrt %cst_8 : f32
    %cst_9 = arith.constant 1.000000e+00 : f32
    %16 = arith.divf %cst_9, %15 : f32
    %17 = arith.mulf %12, %13 : vector<25x10xf32>
    %cst_10 = arith.constant dense<0.000000e+00> : vector<25xf32>
    %18 = vector.multi_reduction <add>, %17, %cst_10 [1] : vector<25x10xf32> to vector<25xf32>
    %19 = vector.shape_cast %18 : vector<25xf32> to vector<25x1xf32>
    %20 = vector.broadcast %16 : f32 to vector<25x1xf32>
    %21 = arith.mulf %19, %20 : vector<25x1xf32>
    %cst_11 = arith.constant dense<0xFF800000> : vector<1xf32>
    %22 = vector.multi_reduction <maximumf>, %21, %cst_11 [0] : vector<25x1xf32> to vector<1xf32>
    %23 = vector.shape_cast %22 : vector<1xf32> to vector<1x1xf32>
    %24 = vector.broadcast %23 : vector<1x1xf32> to vector<25x1xf32>
    %25 = arith.subf %21, %24 : vector<25x1xf32>
    %26 = math.exp %25 : vector<25x1xf32>
    %cst_12 = arith.constant dense<0.000000e+00> : vector<1xf32>
    %27 = vector.multi_reduction <add>, %26, %cst_12 [0] : vector<25x1xf32> to vector<1xf32>
    %28 = vector.shape_cast %27 : vector<1xf32> to vector<1x1xf32>
    %29 = tpu.reciprocal %28 {approx = true} : vector<1x1xf32> -> vector<1x1xf32>
    %30 = vector.broadcast %29 : vector<1x1xf32> to vector<25x1xf32>
    %31 = arith.mulf %26, %30 : vector<25x1xf32>
    %32 = vector.broadcast %31 : vector<25x1xf32> to vector<25x10xf32>
    %33 = arith.mulf %14, %32 : vector<25x10xf32>
    %34 = vector.extract_strided_slice %10 {offsets = [0, 0], sizes = [25, 10], strides = [1, 1]} : vector<50x10xf32> to vector<25x10xf32>
    %cst_13 = arith.constant dense<0.000000e+00> : vector<10x10xf32>
    %35 = tpu.matmul %34, %33, %cst_13 {dimension_numbers = #tpu.dot_dimension_numbers<[0], [0], [1], [1], [0, 1, 1, 1], [], []>} : vector<25x10xf32>, vector<25x10xf32>, vector<10x10xf32> -> vector<10x10xf32>
    %cst_14 = arith.constant 0.000000e+00 : f32
    %36 = vector.broadcast %cst_14 : f32 to vector<10x10xf32>
    %37 = arith.maximumf %35, %36 : vector<10x10xf32>
    %38 = tpu.iota {dimensions = array<i32: 1>} : vector<10x2xi32>
    %c0_15 = arith.constant 0 : index
    %c0_16 = arith.constant 0 : index
    %c1 = arith.constant 1 : index
    %39 = vector.load %arg2[%c0_15, %c0_16, %c1] : memref<1x50x2xi32, #tpu.memory_space<vmem>>, vector<1x10x1xi32>
    %40 = vector.shape_cast %39 : vector<1x10x1xi32> to vector<10x1xi32>
    %41 = vector.broadcast %40 : vector<10x1xi32> to vector<10x2xi32>
    %42 = arith.cmpi eq, %38, %41 : vector<10x2xi32>
    %43 = arith.extui %42 : vector<10x2xi1> to vector<10x2xi32>
    %44 = arith.sitofp %43 : vector<10x2xi32> to vector<10x2xf32>
    %cst_17 = arith.constant dense<0.000000e+00> : vector<2xf32>
    %45 = vector.multi_reduction <add>, %44, %cst_17 [0] : vector<10x2xf32> to vector<2xf32>
    %46 = vector.shape_cast %45 : vector<2xf32> to vector<1x2xf32>
    %cst_18 = arith.constant 1.000000e+00 : f32
    %47 = vector.broadcast %cst_18 : f32 to vector<1x2xf32>
    %48 = arith.maximumf %46, %47 : vector<1x2xf32>
    %49 = vector.broadcast %48 : vector<1x2xf32> to vector<10x2xf32>
    %50 = arith.divf %44, %49 : vector<10x2xf32>
    %cst_19 = arith.constant dense<0.000000e+00> : vector<2x10xf32>
    %51 = tpu.matmul %50, %37, %cst_19 {dimension_numbers = #tpu.dot_dimension_numbers<[0], [0], [1], [1], [0, 1, 1, 1], [], []>} : vector<10x2xf32>, vector<10x10xf32>, vector<2x10xf32> -> vector<2x10xf32>
    %c0_20 = arith.constant 0 : index
    %c0_21 = arith.constant 0 : index
    %52 = vector.load %arg4[%c0_20, %c0_21] : memref<11x128xf32, #tpu.memory_space<vmem>>, vector<10x128xf32>
    %cst_22 = arith.constant dense<0.000000e+00> : vector<2x128xf32>
    %53 = tpu.matmul %51, %52, %cst_22 {dimension_numbers = #tpu.dot_dimension_numbers<[1], [0], [0], [1], [0, 0, 1, 1], [], []>} : vector<2x10xf32>, vector<10x128xf32>, vector<2x128xf32> -> vector<2x128xf32>
    %c10 = arith.constant 10 : index
    %c0_23 = arith.constant 0 : index
    %54 = vector.load %arg4[%c10, %c0_23] : memref<11x128xf32, #tpu.memory_space<vmem>>, vector<1x128xf32>
    %55 = vector.broadcast %54 : vector<1x128xf32> to vector<2x128xf32>
    %56 = arith.addf %53, %55 : vector<2x128xf32>
    %c0_24 = arith.constant 0 : index
    %c0_25 = arith.constant 0 : index
    %c0_26 = arith.constant 0 : index
    %57 = vector.load %arg5[%c0_24, %c0_25, %c0_26] : memref<1x2x128xf32, #tpu.memory_space<vmem>>, vector<1x2x128xf32>
    %58 = vector.shape_cast %57 : vector<1x2x128xf32> to vector<2x128xf32>
    %59 = vector.shape_cast %56 : vector<2x128xf32> to vector<1x2x128xf32>
    tpu.vector_store %arg5[%c0_24, %c0_25, %c0_26], %59 {strides = array<i32>} : memref<1x2x128xf32, #tpu.memory_space<vmem>>, vector<1x2x128xf32>,
    return
  }
  func.func @transform_0(%arg0: i32) -> (i32, i32, i32) {
    %c0_i32 = arith.constant 0 : i32
    %c0_i32_0 = arith.constant 0 : i32
    %c0_i32_1 = arith.constant 0 : i32
    return %arg0, %c0_i32, %c0_i32_0 : i32, i32, i32
  }
  func.func @transform_1(%arg0: i32) -> (i32, i32, i32) {
    %c0_i32 = arith.constant 0 : i32
    %c0_i32_0 = arith.constant 0 : i32
    %c0_i32_1 = arith.constant 0 : i32
    return %arg0, %c0_i32, %c0_i32_0 : i32, i32, i32
  }
  func.func @transform_2(%arg0: i32) -> (i32, i32) {
    %c0_i32 = arith.constant 0 : i32
    %c0_i32_0 = arith.constant 0 : i32
    %c0_i32_1 = arith.constant 0 : i32
    return %c0_i32, %c0_i32_0 : i32, i32
  }
  func.func @transform_3(%arg0: i32) -> (i32, i32) {
    %c0_i32 = arith.constant 0 : i32
    %c0_i32_0 = arith.constant 0 : i32
    %c0_i32_1 = arith.constant 0 : i32
    return %c0_i32, %c0_i32_0 : i32, i32
  }
  func.func @transform_4(%arg0: i32) -> (i32, i32, i32) {
    %c0_i32 = arith.constant 0 : i32
    %c0_i32_0 = arith.constant 0 : i32
    %c0_i32_1 = arith.constant 0 : i32
    return %arg0, %c0_i32, %c0_i32_0 : i32, i32, i32
  }
}

</mosaic_0001>

<llo_original>
// kernel: gat_graph_classifier.1
$region0: #{gat_graph_classifier.1}
  #allocation0 [shape = 'u32[]', space=smem, size = 0x4, offset = 0x4, fixed_abs, tag = 'smem constant byte address 0x4 - core index']
  #allocation1 [shape = 'u32[144,128]{1,0:T(1,128)}', space=vmem, size = 0x12000, scoped, tag = 'internal scratch']
  %s0 = inlined_call_operand.vmem [shape: bf16[4,10,6], index: 0, kind: input, shape index: {}]
  %s1 = inlined_call_operand.vmem [shape: s32[4,50,2], index: 1, kind: input, shape index: {}]
  %s2 = inlined_call_operand.vmem [shape: bf16[6,30], index: 2, kind: input, shape index: {}]
  %s3 = inlined_call_operand.vmem [shape: f32[11,128], index: 3, kind: input, shape index: {}]
  %s4 = inlined_call_operand.vmem [shape: f32[4,2,128], index: 4, kind: output, shape index: {}]
  %s5 = sld [smem:[#allocation0]]
  $region49: #{gat_graph_classifier.1} parent=0
    _
  %s7 = ssub.s32 1, %s5
  %s8 = scalar_select 0, %s7, %s5
  loop: start=0, step=1, limit=6
  $region2: #{gat_graph_classifier.1} parent=0 // loop_pre_header
    _
  $region3: #{gat_graph_classifier.1} parent=0 // loop_header
    %s10 = sphi 0, %s14
    %p11 = scmp.ge.s32.totalorder %s10, 6
    %s20 = sphi 0, %s22
    %s23 = sphi 0, %s20
    %s24 = sphi 0, %s23
    %s40 = sphi 0, %s24
    %s46 = sphi 0, %s48
    %s49 = sphi 0, %s46
    %s50 = sphi 0, %s49
    %s66 = sphi 0, %s50
    %s70 = sphi 0, %s70
    %s72 = sphi 0, %s70
    %s73 = sphi 0, %s72
    %s87 = sphi 0, %s73
    %s91 = sphi 0, %s91
    %s93 = sphi 0, %s91
    %s94 = sphi 0, %s93
    %s108 = sphi 0, %s94
    %s114 = sphi 0, %s116
    %s117 = sphi 0, %s114
    %s118 = sphi 0, %s117
    %s134 = sphi 0, %s118
  $region4: #{gat_graph_classifier.1} parent=0 // loop_header_branch
    %13 = sbr.rel (%p11) target = $region8
  $region5: #{gat_graph_classifier.1} parent=0 // loop_body
    %s15 = ssub.s32 %s10, 1
    %s16 = ssub.s32 %s10, 2
    %s17 = sadd.s32 %s10, 1
    %s18 = ssub.s32 %s10, %s17
    %p19 = scmp.eq.s32.totalorder %s18, 0
    %s21 = sadd.s32 %s20, 1
    %s22 = scalar_select %p19, %s20, %s21
    %p25 = pneg %p19
    %p26 = scmp.eq.s32.totalorder %s10, 3
    %p27 = por %p25, %p26
    %p28 = scmp.ne.s32.totalorder %s20, %s23
    %p29 = scmp.eq.s32.totalorder %s10, 0
    %p30 = por %p28, %p29
    %p31 = scmp.ne.s32.totalorder %s20, %s23
    %p32 = scmp.eq.s32.totalorder %s15, 3
    %p33 = por %p31, %p32
    %p34 = scmp.ne.s32.totalorder %s23, %s24
    %p35 = scmp.eq.s32.totalorder %s15, 0
    %p36 = por %p34, %p35
    %p37 = scmp.ne.s32.totalorder %s23, %s24
    %p38 = scmp.eq.s32.totalorder %s16, 3
    %p39 = por %p37, %p38
    %p41 = scmp.ne.s32.totalorder %s24, %s40
    %p42 = scmp.eq.s32.totalorder %s16, 0
    %p43 = por %p41, %p42
    %s44 = ssub.s32 %s10, %s17
    %p45 = scmp.eq.s32.totalorder %s44, 0
    %s47 = sadd.s32 %s46, 1
    %s48 = scalar_select %p45, %s46, %s47
    %p51 = pneg %p45
    %p52 = scmp.eq.s32.totalorder %s10, 3
    %p53 = por %p51, %p52
    %p54 = scmp.ne.s32.totalorder %s46, %s49
    %p55 = scmp.eq.s32.totalorder %s10, 0
    %p56 = por %p54, %p55
    %p57 = scmp.ne.s32.totalorder %s46, %s49
    %p58 = scmp.eq.s32.totalorder %s15, 3
    %p59 = por %p57, %p58
    %p60 = scmp.ne.s32.totalorder %s49, %s50
    %p61 = scmp.eq.s32.totalorder %s15, 0
    %p62 = por %p60, %p61
    %p63 = scmp.ne.s32.totalorder %s49, %s50
    %p64 = scmp.eq.s32.totalorder %s16, 3
    %p65 = por %p63, %p64
    %p67 = scmp.ne.s32.totalorder %s50, %s66
    %p68 = scmp.eq.s32.totalorder %s16, 0
    %p69 = por %p67, %p68
    %s71 = sadd.s32 %s70, 1
    %p74 = scmp.eq.s32.totalorder %s10, 3
    %p75 = scmp.ne.s32.totalorder %s70, %s72
    %p76 = scmp.eq.s32.totalorder %s10, 0
    %p77 = por %p75, %p76
    %p78 = scmp.ne.s32.totalorder %s70, %s72
    %p79 = scmp.eq.s32.totalorder %s15, 3
    %p80 = por %p78, %p79
    %p81 = scmp.ne.s32.totalorder %s72, %s73
    %p82 = scmp.eq.s32.totalorder %s15, 0
    %p83 = por %p81, %p82
    %p84 = scmp.ne.s32.totalorder %s72, %s73
    %p85 = scmp.eq.s32.totalorder %s16, 3
    %p86 = por %p84, %p85
    %p88 = scmp.ne.s32.totalorder %s73, %s87
    %p89 = scmp.eq.s32.totalorder %s16, 0
    %p90 = por %p88, %p89
    %s92 = sadd.s32 %s91, 1
    %p95 = scmp.eq.s32.totalorder %s10, 3
    %p96 = scmp.ne.s32.totalorder %s91, %s93
    %p97 = scmp.eq.s32.totalorder %s10, 0
    %p98 = por %p96, %p97
    %p99 = scmp.ne.s32.totalorder %s91, %s93
    %p100 = scmp.eq.s32.totalorder %s15, 3
    %p101 = por %p99, %p100
    %p102 = scmp.ne.s32.totalorder %s93, %s94
    %p103 = scmp.eq.s32.totalorder %s15, 0
    %p104 = por %p102, %p103
    %p105 = scmp.ne.s32.totalorder %s93, %s94
    %p106 = scmp.eq.s32.totalorder %s16, 3
    %p107 = por %p105, %p106
    %p109 = scmp.ne.s32.totalorder %s94, %s108
    %p110 = scmp.eq.s32.totalorder %s16, 0
    %p111 = por %p109, %p110
    %s112 = ssub.s32 %s10, %s17
    %p113 = scmp.eq.s32.totalorder %s112, 0
    %s115 = sadd.s32 %s114, 1
    %s116 = scalar_select %p113, %s114, %s115
    %p119 = pneg %p113
    %p120 = scmp.eq.s32.totalorder %s10, 3
    %p121 = por %p119, %p120
    %p122 = scmp.ne.s32.totalorder %s114, %s117
    %p123 = scmp.eq.s32.totalorder %s10, 0
    %p124 = por %p122, %p123
    %p125 = scmp.ne.s32.totalorder %s114, %s117
    %p126 = scmp.eq.s32.totalorder %s15, 3
    %p127 = por %p125, %p126
    %p128 = scmp.ne.s32.totalorder %s117, %s118
    %p129 = scmp.eq.s32.totalorder %s15, 0
    %p130 = por %p128, %p129
    %p131 = scmp.ne.s32.totalorder %s117, %s118
    %p132 = scmp.eq.s32.totalorder %s16, 3
    %p133 = por %p131, %p132
    %p135 = scmp.ne.s32.totalorder %s118, %s134
    %p136 = scmp.eq.s32.totalorder %s16, 0
    %p137 = por %p135, %p136
    %p138 = scmp.le.s32.totalorder 1, %s10
    %p139 = scmp.lt.s32.totalorder %s10, 5
    %p140 = pnand %p138, %p139
    %p141 = pneg %p140
    // Predicated region
    $region9: #{gat_graph_classifier.1} parent=5 // pred_check
      _
    $region10: #{gat_graph_classifier.1} parent=5 // pred_check_branch
      %143 = sbr.rel (%p140) target = $region12
    $region11: #{gat_graph_classifier.1} parent=5 // pred_region
      %s144 = ssub.s32 %s10, 1
      // Predicated region
      $region13: #{gat_graph_classifier.1} parent=11 // pred_check
        %p145 = pneg %p83
      $region14: #{gat_graph_classifier.1} parent=11 // pred_check_branch
        %147 = sbr.rel (%p145) target = $region16
      $region15: #{gat_graph_classifier.1} parent=11 // pred_region
        _
      $region16: #{gat_graph_classifier.1} parent=11 // pred_fallthru
        _
      // Predicated region
      $region17: #{gat_graph_classifier.1} parent=11 // pred_check
        %p148 = pneg %p104
      $region18: #{gat_graph_classifier.1} parent=11 // pred_check_branch
        %150 = sbr.rel (%p148) target = $region20
      $region19: #{gat_graph_classifier.1} parent=11 // pred_region
        _
      $region20: #{gat_graph_classifier.1} parent=11 // pred_fallthru
        _
    $region12: #{gat_graph_classifier.1} parent=5 // pred_fallthru
      _
    %p151 = scmp.lt.s32.totalorder %s10, 4
    // Predicated region
    $region21: #{gat_graph_classifier.1} parent=5 // pred_check
      %p152 = pneg %p151
    $region22: #{gat_graph_classifier.1} parent=5 // pred_check_branch
      %154 = sbr.rel (%p152) target = $region24
    $region23: #{gat_graph_classifier.1} parent=5 // pred_region
      // Predicated region
      $region25: #{gat_graph_classifier.1} parent=23 // pred_check
        %p155 = pneg %p30
      $region26: #{gat_graph_classifier.1} parent=23 // pred_check_branch
        %157 = sbr.rel (%p155) target = $region28
      $region27: #{gat_graph_classifier.1} parent=23 // pred_region
        %p158 = scmp.lt.s32.totalorder %s10, 3
        %s159 = scalar_select %p158, %s10, 3
        %s160 = smul.addr %s159, 2
        %s161 = smul.addr %s160, 4
        %s162 = scalar_lea.vmem %s0, %s161
      $region28: #{gat_graph_classifier.1} parent=23 // pred_fallthru
        _
      // Predicated region
      $region29: #{gat_graph_classifier.1} parent=23 // pred_check
        %p163 = pneg %p56
      $region30: #{gat_graph_classifier.1} parent=23 // pred_check_branch
        %165 = sbr.rel (%p163) target = $region32
      $region31: #{gat_graph_classifier.1} parent=23 // pred_region
        %p166 = scmp.lt.s32.totalorder %s10, 3
        %s167 = scalar_select %p166, %s10, 3
        %s168 = smul.addr %s167, 7
        %s169 = smul.addr %s168, 8
        %s170 = scalar_lea.vmem %s1, %s169
      $region32: #{gat_graph_classifier.1} parent=23 // pred_fallthru
        _
    $region24: #{gat_graph_classifier.1} parent=5 // pred_fallthru
      _
    %p171 = scmp.le.s32.totalorder 1, %s10
    %p172 = scmp.lt.s32.totalorder %s10, 5
    %p173 = pnand %p171, %p172
    %p174 = pneg %p173
    // Predicated region
    $region33: #{gat_graph_classifier.1} parent=5 // pred_check
      _
    $region34: #{gat_graph_classifier.1} parent=5 // pred_check_branch
      %176 = sbr.rel (%p173) target = $region36
    $region35: #{gat_graph_classifier.1} parent=5 // pred_region
      %s177 = ssub.s32 %s10, 1
      %p178 = scmp.lt.s32.totalorder %s15, 3
      %s179 = scalar_select %p178, %s15, 3
      %s180 = smul.addr %s179, 2
      %s181 = smul.addr %s180, 4
      %s182 = scalar_lea.vmem %s0, %s181
      %p183 = pneg %p36
      %p184 = pneg %p33
      %p185 = scmp.lt.s32.totalorder %s15, 3
      %s186 = scalar_select %p185, %s15, 3
      %s187 = smul.addr %s186, 7
      %s188 = smul.addr %s187, 8
      %s189 = scalar_lea.vmem %s1, %s188
      %p190 = pneg %p62
      %p191 = pneg %p59
      %p192 = pneg %p83
      %p193 = pneg %p80
      %p194 = pneg %p104
      %p195 = pneg %p101
      %p196 = pneg %p130
      %p197 = pneg %p127
      %p198 = scmp.lt.s32.totalorder %s15, 3
      %s199 = scalar_select %p198, %s15, 3
      %s200 = smul.addr %s199, 2
      %s201 = scalar_lea.vmem %s4, %s200
      %p202 = scmp.lt.s32.totalorder %s15, 3
      %s203 = scalar_select %p202, %s15, 3
      %s204 = smul.addr %s203, 2
      %s205 = smul.addr %s204, 4
      %s206 = scalar_lea.vmem %s0, %s205
      %p207 = scmp.lt.s32.totalorder %s15, 3
      %s208 = scalar_select %p207, %s15, 3
      %s209 = smul.addr %s208, 7
      %s210 = smul.addr %s209, 8
      %s211 = scalar_lea.vmem %s1, %s210
      %p212 = scmp.lt.s32.totalorder %s15, 3
      %s213 = scalar_select %p212, %s15, 3
      %s214 = smul.addr %s213, 2
      %s215 = scalar_lea.vmem %s4, %s214
      %v217 = vld [vmem:[%s206] sm:$0xf]
      %v218 = vld [vmem:[%s206 + $0x4] sm:$0x1]
      %v219 = vld [vmem:[%s2] sm:$0x7]
      %v222 = vunpack.c.l.b16 %v217
      %v223 = vunpack.c.l.b16 %v218
      %v224 = vpack.c.b16 %v223, %v222
      %vm225 = vcmask 48128
      %v227 = vsel %vm225, %v224, 0
      %vm229 = vcmask 1042432
      %v231 = vsel %vm229, %v219, 0
      %233 = vmatprep.subr.bf16.mxu0 0
      %234 = vmatpush1.bf16.msra.mxu0 %v231
      %235 = vmatprep.subr.bf16.mxu0 0
      %236 = vmatpush1.bf16.msra.mxu0 0
      %237 = vmatprep.subr.bf16.mxu0 0
      %238 = vmatpush1.bf16.msra.mxu0 0
      %239 = vmatprep.subr.bf16.mxu0 0
      %240 = vmatpush1.bf16.msra.mxu0 0
      %241 = vmatprep.subr.bf16.mxu0 0
      %242 = vmatpush1.bf16.msra.mxu0 0
      %243 = vmatprep.subr.bf16.mxu0 0
      %244 = vmatpush1.bf16.msra.mxu0 0
      %245 = vmatprep.subr.bf16.mxu0 0
      %246 = vmatpush1.bf16.msra.mxu0 0
      %247 = vmatprep.subr.bf16.mxu0 0
      %248 = vmatpush1.bf16.msra.mxu0 0
      %249 = vmatprep.subr.bf16.mxu0 0
      %250 = vmatpush1.bf16.msra.mxu0 0
      %251 = vmatprep.subr.bf16.mxu0 0
      %252 = vmatpush1.bf16.msra.mxu0 0
      %253 = vmatprep.subr.bf16.mxu0 0
      %254 = vmatpush1.bf16.msra.mxu0 0
      %255 = vmatprep.subr.bf16.mxu0 0
      %256 = vmatpush1.bf16.msra.mxu0 0
      %257 = vmatprep.subr.bf16.mxu0 0
      %258 = vmatpush1.bf16.msra.mxu0 0
      %259 = vmatprep.subr.bf16.mxu0 0
      %260 = vmatpush1.bf16.msra.mxu0 0
      %261 = vmatprep.subr.bf16.mxu0 0
      %262 = vmatpush1.bf16.msra.mxu0 0
      %263 = vmatprep.subr.bf16.mxu0 0
      %264 = vmatpush1.bf16.msra.mxu0 0
      %265 = vmatprep.mubr.bf16.mxu0 0
      %266 = vmatmul.mubr.bf16.gmra.mrb[0].mxu0 %v227
      %v267 = vpop.f32.mrb[0].mxu0
      %v268 = vadd.f32 0.0, %v267
      %v269 = vpop.f32.mrb[0].mxu0
      %v270 = vpop.f32.mrb[0].mxu0
      %v271 = vadd.f32 0.0, %v270
      %v272 = vpop.f32.mrb[0].mxu0
      %273 = vdwg.mxu0
      %v274 = vlaneseq
      %v275 = vand.u32 %v274, 127
      %v276 = vld [vmem:[%s211] sm:$0xff]
      %v277 = vld [vmem:[%s211 + $0x8] sm:$0xff]
      %v278 = vld [vmem:[%s211 + $0x10] sm:$0xff]
      %v279 = vld [vmem:[%s211 + $0x18] sm:$0xff]
      %v280 = vld [vmem:[%s211 + $0x20] sm:$0xff]
      %v281 = vld [vmem:[%s211 + $0x28] sm:$0xff]
      %v282 = vld [vmem:[%s211 + $0x30] sm:$0x3]
      %283 = vset.pattern.permute.xlu0 0
      %284 = vperm.xlu0 %283, %v276
      %v285 = vpop.permute.xlu0 %284
      %286 = vset.pattern.permute.xlu0 0
      %287 = vperm.xlu0 %286, %v277
      %v288 = vpop.permute.xlu0 %287
      %289 = vset.pattern.permute.xlu0 0
      %290 = vperm.xlu0 %289, %v278
      %v291 = vpop.permute.xlu0 %290
      %292 = vset.pattern.permute.xlu0 0
      %293 = vperm.xlu0 %292, %v279
      %v294 = vpop.permute.xlu0 %293
      %295 = vset.pattern.permute.xlu0 0
      %296 = vperm.xlu0 %295, %v280
      %v297 = vpop.permute.xlu0 %296
      %298 = vset.pattern.permute.xlu0 0
      %299 = vperm.xlu0 %298, %v281
      %v300 = vpop.permute.xlu0 %299
      %301 = vset.pattern.permute.xlu0 0
      %302 = vperm.xlu0 %301, %v282
      %v303 = vpop.permute.xlu0 %302
      %vm304 = vcmp.eq.s32.totalorder %v275, %v285
      %vm305 = vcmp.eq.s32.totalorder %v275, %v288
      %vm306 = vcmp.eq.s32.totalorder %v275, %v291
      %vm307 = vcmp.eq.s32.totalorder %v275, %v294
      %vm308 = vcmp.eq.s32.totalorder %v275, %v297
      %vm309 = vcmp.eq.s32.totalorder %v275, %v300
      %vm310 = vcmp.eq.s32.totalorder %v275, %v303
      %v311 = vsel %vm304, 1, 0
      %v312 = vsel %vm305, 1, 0
      %v313 = vsel %vm306, 1, 0
      %v314 = vsel %vm307, 1, 0
      %v315 = vsel %vm308, 1, 0
      %v316 = vsel %vm309, 1, 0
      %v317 = vsel %vm310, 1, 0
      %v318 = vcvt.s32.f32 %v311
      %v319 = vcvt.s32.f32 %v312
      %v320 = vcvt.s32.f32 %v313
      %v321 = vcvt.s32.f32 %v314
      %v322 = vcvt.s32.f32 %v315
      %v323 = vcvt.s32.f32 %v316
      %v324 = vcvt.s32.f32 %v317
      %vm325 = vcmask 80896
      %v327 = vsel %vm325, %v318, 0
      %v330 = vsel %vm325, %v319, 0
      %v333 = vsel %vm325, %v320, 0
      %v336 = vsel %vm325, %v321, 0
      %v339 = vsel %vm325, %v322, 0
      %v342 = vsel %vm325, %v323, 0
      %v345 = vsel %vm325, %v324, 0
      %vm347 = vcmask 1041408
      %v349 = vsel %vm347, %v271, 0
      %351 = vmatprep.subr.mxu0 0.0
      %352 = vmatpush1.msra.mxu0 %v268
      %353 = vmatprep.subr.mxu0 0.0
      %354 = vmatpush1.msra.mxu0 %v349
      %355 = vmatprep.subr.mxu0 0.0
      %356 = vmatpush1.msra.mxu0 0.0
      %357 = vmatprep.subr.mxu0 0.0
      %358 = vmatpush1.msra.mxu0 0.0
      %359 = vmatprep.subr.mxu0 0.0
      %360 = vmatpush1.msra.mxu0 0.0
      %361 = vmatprep.subr.mxu0 0.0
      %362 = vmatpush1.msra.mxu0 0.0
      %363 = vmatprep.subr.mxu0 0.0
      %364 = vmatpush1.msra.mxu0 0.0
      %365 = vmatprep.subr.mxu0 0.0
      %366 = vmatpush1.msra.mxu0 0.0
      %367 = vmatprep.subr.mxu0 0.0
      %368 = vmatpush1.msra.mxu0 0.0
      %369 = vmatprep.subr.mxu0 0.0
      %370 = vmatpush1.msra.mxu0 0.0
      %371 = vmatprep.subr.mxu0 0.0
      %372 = vmatpush1.msra.mxu0 0.0
      %373 = vmatprep.subr.mxu0 0.0
      %374 = vmatpush1.msra.mxu0 0.0
      %375 = vmatprep.subr.mxu0 0.0
      %376 = vmatpush1.msra.mxu0 0.0
      %377 = vmatprep.subr.mxu0 0.0
      %378 = vmatpush1.msra.mxu0 0.0
      %379 = vmatprep.subr.mxu0 0.0
      %380 = vmatpush1.msra.mxu0 0.0
      %381 = vmatprep.subr.mxu0 0.0
      %382 = vmatpush1.msra.mxu0 0.0
      %383 = vmatprep.subr.mxu0 0.0
      %384 = vmatpush1.msra.mxu0 0.0
      %385 = vmatprep.subr.mxu0 0.0
      %386 = vmatpush1.msra.mxu0 0.0
      %387 = vmatprep.subr.mxu0 0.0
      %388 = vmatpush1.msra.mxu0 0.0
      %389 = vmatprep.subr.mxu0 0.0
      %390 = vmatpush1.msra.mxu0 0.0
      %391 = vmatprep.subr.mxu0 0.0
      %392 = vmatpush1.msra.mxu0 0.0
      %393 = vmatprep.subr.mxu0 0.0
      %394 = vmatpush1.msra.mxu0 0.0
      %395 = vmatprep.subr.mxu0 0.0
      %396 = vmatpush1.msra.mxu0 0.0
      %397 = vmatprep.subr.mxu0 0.0
      %398 = vmatpush1.msra.mxu0 0.0
      %399 = vmatprep.subr.mxu0 0.0
      %400 = vmatpush1.msra.mxu0 0.0
      %401 = vmatprep.subr.mxu0 0.0
      %402 = vmatpush1.msra.mxu0 0.0
      %403 = vmatprep.subr.mxu0 0.0
      %404 = vmatpush1.msra.mxu0 0.0
      %405 = vmatprep.subr.mxu0 0.0
      %406 = vmatpush1.msra.mxu0 0.0
      %407 = vmatprep.subr.mxu0 0.0
      %408 = vmatpush1.msra.mxu0 0.0
      %409 = vmatprep.subr.mxu0 0.0
      %410 = vmatpush1.msra.mxu0 0.0
      %411 = vmatprep.subr.mxu0 0.0
      %412 = vmatpush1.msra.mxu0 0.0
      %413 = vmatprep.subr.mxu0 0.0
      %414 = vmatpush1.msra.mxu0 0.0
      %415 = vmatprep.mubr.f32.mxu0 0.0
      %416 = vmatmul.mubr.f32.gmra.mrb[0].mxu0 %v327
      %v417 = vpop.f32.mrb[0].mxu0
      %v418 = vadd.f32 0.0, %v417
      %v419 = vpop.f32.mrb[0].mxu0
      %420 = vmatprep.mubr.f32.mxu0 0.0
      %421 = vmatmul.mubr.f32.gmra.mrb[0].mxu0 %v330
      %v422 = vpop.f32.mrb[0].mxu0
      %v423 = vadd.f32 0.0, %v422
      %v424 = vpop.f32.mrb[0].mxu0
      %425 = vmatprep.mubr.f32.mxu0 0.0
      %426 = vmatmul.mubr.f32.gmra.mrb[0].mxu0 %v333
      %v427 = vpop.f32.mrb[0].mxu0
      %v428 = vadd.f32 0.0, %v427
      %v429 = vpop.f32.mrb[0].mxu0
      %430 = vmatprep.mubr.f32.mxu0 0.0
      %431 = vmatmul.mubr.f32.gmra.mrb[0].mxu0 %v336
      %v432 = vpop.f32.mrb[0].mxu0
      %v433 = vadd.f32 0.0, %v432
      %v434 = vpop.f32.mrb[0].mxu0
      %435 = vmatprep.mubr.f32.mxu0 0.0
      %436 = vmatmul.mubr.f32.gmra.mrb[0].mxu0 %v339
      %v437 = vpop.f32.mrb[0].mxu0
      %v438 = vadd.f32 0.0, %v437
      %v439 = vpop.f32.mrb[0].mxu0
      %440 = vmatprep.mubr.f32.mxu0 0.0
      %441 = vmatmul.mubr.f32.gmra.mrb[0].mxu0 %v342
      %v442 = vpop.f32.mrb[0].mxu0
      %v443 = vadd.f32 0.0, %v442
      %v444 = vpop.f32.mrb[0].mxu0
      %445 = vmatprep.mubr.f32.mxu0 0.0
      %446 = vmatmul.mubr.f32.gmra.mrb[0].mxu0 %v345
      %v447 = vpop.f32.mrb[0].mxu0
      %v448 = vadd.f32 0.0, %v447
      %v449 = vpop.f32.mrb[0].mxu0
      %450 = vdwg.mxu0
      %vm455 = vcmask 1046528
      %v456 = vrot.slane %v433, 1
      %v457 = vrot.slane %v438, 1
      %v458 = vsel %vm455, %v456, %v457
      %v459 = vrot.slane %v443, 1
      %v460 = vsel %vm455, %v457, %v459
      %v461 = vrot.slane %v448, 1
      %v462 = vsel %vm455, %v459, %v461
      %463 = vrot.lane.b32.xlu0 %v458, 118
      %v464 = vpop.permute.xlu0 %463
      %465 = vrot.lane.b32.xlu0 %v460, 118
      %v466 = vpop.permute.xlu0 %465
      %467 = vrot.lane.b32.xlu0 %v462, 118
      %v468 = vpop.permute.xlu0 %467
      %469 = vrot.lane.b32.xlu0 %v461, 118
      %v470 = vpop.permute.xlu0 %469
      %v475 = vmul.f32 %v418, %v464
      %v476 = vmul.f32 %v423, %v466
      %v477 = vmul.f32 %v428, %v468
      %v478 = vmul.f32 %v433, %v470
      %v479 = vsel %vm325, %v475, 0.0
      %480 = vadd.xlane.f32.xlu0 %v479
      %v481 = vpop.xlane.xlu0 %480
      %v482 = vsel %vm325, %v476, 0.0
      %483 = vadd.xlane.f32.xlu0 %v482
      %v484 = vpop.xlane.xlu0 %483
      %v485 = vsel %vm325, %v477, 0.0
      %486 = vadd.xlane.f32.xlu0 %v485
      %v487 = vpop.xlane.xlu0 %486
      %vm488 = vcmask 73728
      %v489 = vsel %vm488, %v478, 0.0
      %490 = vadd.xlane.f32.xlu0 %v489
      %v491 = vpop.xlane.xlu0 %490
      %v492 = vmul.f32 %v481, 0.31622776
      %v493 = vmul.f32 %v484, 0.31622776
      %v494 = vmul.f32 %v487, 0.31622776
      %v495 = vmul.f32 %v491, 0.31622776
      %vm496 = vcmask 1040384
      %v497 = vsel %vm496, %v495, -inf
      %v498 = vmax.f32 %v492, %v493
      %v499 = vmax.f32 %v494, %v497
      %v500 = vmax.f32 %v498, %v499
      %v501 = vrot.slane %v500, 4
      %v502 = vmax.f32 %v500, %v501
      %v503 = vrot.slane %v502, 2
      %v504 = vmax.f32 %v502, %v503
      %v505 = vrot.slane %v504, 1
      %v506 = vmax.f32 %v504, %v505
      %v507 = vsub.f32 %v492, %v506
      %v508 = vsub.f32 %v493, %v506
      %v509 = vsub.f32 %v494, %v506
      %v510 = vsub.f32 %v495, %v506
      %v511 = vmul.f32 %v507, 1.442695
      %v512 = vpow.pop %v511
      %v513 = vmul.f32 %v508, 1.442695
      %v514 = vpow.pop %v513
      %v515 = vmul.f32 %v509, 1.442695
      %v516 = vpow.pop %v515
      %v517 = vmul.f32 %v510, 1.442695
      %v518 = vpow.pop %v517
      %v519 = vadd.f32 %v512, %v514
      %v520 = vadd.f32 %v519, %v516
      %v521 = vsel %vm496, %v518, 0.0
      %v522 = vadd.f32 %v520, %v521
      %v523 = vrot.slane %v522, 4
      %v524 = vadd.f32 %v522, %v523
      %v525 = vrot.slane %v524, 2
      %v526 = vadd.f32 %v524, %v525
      %v527 = vrot.slane %v526, 1
      %v528 = vadd.f32 %v526, %v527
      %v529 = vrcp.pop %v528
      %v530 = vmul.f32 %v512, %v529
      %v531 = vmul.f32 %v514, %v529
      %v532 = vmul.f32 %v516, %v529
      %v533 = vmul.f32 %v518, %v529
      %v538 = vrot.slane %v530, 7
      %v539 = vrot.slane %v531, 7
      %v540 = vsel %vm496, %v538, %v539
      %v541 = vrot.slane %v532, 7
      %v542 = vsel %vm496, %v539, %v541
      %v543 = vrot.slane %v533, 7
      %v544 = vsel %vm496, %v541, %v543
      %v549 = vmul.f32 %v433, %v538
      %v550 = vmul.f32 %v438, %v540
      %v551 = vmul.f32 %v443, %v542
      %v552 = vmul.f32 %v448, %v544
      %553 = vxpose.xlu0.b32.start [1/16] %v318, 128
      %554 = vxpose.xlu0.b32.cont [2/16] %v319, 128
      %555 = vxpose.xlu0.b32.cont [3/16] %v320, 128
      %556 = vxpose.xlu0.b32.cont [4/16] %v321, 128
      %557 = vxpose.xlu0.b32.cont [5/16] 0.0, 128
      %558 = vxpose.xlu0.b32.cont [6/16] 0.0, 128
      %559 = vxpose.xlu0.b32.cont [7/16] 0.0, 128
      %560 = vxpose.xlu0.b32.cont [8/16] 0.0, 128
      %561 = vxpose.xlu0.b32.cont [9/16] 0.0, 128
      %562 = vxpose.xlu0.b32.cont [10/16] 0.0, 128
      %563 = vxpose.xlu0.b32.cont [11/16] 0.0, 128
      %564 = vxpose.xlu0.b32.cont [12/16] 0.0, 128
      %565 = vxpose.xlu0.b32.cont [13/16] 0.0, 128
      %566 = vxpose.xlu0.b32.cont [14/16] 0.0, 128
      %567 = vxpose.xlu0.b32.cont [15/16] 0.0, 128
      %568 = vxpose.xlu0.b32.end [16/16] 0.0, 128
      %v569 = vpop.trf.xlu0
      %v570 = vpop.trf.xlu0
      %v571 = vpop.trf.xlu0
      %v572 = vpop.trf.xlu0
      %v573 = vpop.trf.xlu0
      %v574 = vpop.trf.xlu0
      %v575 = vpop.trf.xlu0
      %v576 = vpop.trf.xlu0
      %v577 = vpop.trf.xlu0
      %v578 = vpop.trf.xlu0
      %v579 = vpop.trf.xlu0
      %v580 = vpop.trf.xlu0
      %v581 = vpop.trf.xlu0
      %v582 = vpop.trf.xlu0
      %v583 = vpop.trf.xlu0
      %v584 = vpop.trf.xlu0
      %v589 = vrot.slane %v549, 1
      %v590 = vrot.slane %v550, 1
      %v591 = vsel %vm455, %v589, %v590
      %v592 = vrot.slane %v551, 1
      %v593 = vsel %vm455, %v590, %v592
      %v594 = vrot.slane %v552, 1
      %v595 = vsel %vm455, %v592, %v594
      %596 = vrot.lane.b32.xlu0 %v591, 108
      %v597 = vpop.permute.xlu0 %596
      %598 = vrot.lane.b32.xlu0 %v593, 108
      %v599 = vpop.permute.xlu0 %598
      %600 = vrot.lane.b32.xlu0 %v595, 108
      %v601 = vpop.permute.xlu0 %600
      %602 = vrot.lane.b32.xlu0 %v594, 108
      %v603 = vpop.permute.xlu0 %602
      %vm607 = vcmask 203776
      %v609 = vsel %vm607, %v569, 0
      %v612 = vsel %vm607, %v570, 0
      %v614 = vsel %vm496, %v603, 0
      %616 = vmatprep.subr.mxu0 0.0
      %617 = vmatpush1.msra.mxu0 %v597
      %618 = vmatprep.subr.mxu0 0.0
      %619 = vmatpush1.msra.mxu0 %v599
      %620 = vmatprep.subr.mxu0 0.0
      %621 = vmatpush1.msra.mxu0 %v601
      %622 = vmatprep.subr.mxu0 0.0
      %623 = vmatpush1.msra.mxu0 %v614
      %624 = vmatprep.subr.mxu0 0.0
      %625 = vmatpush1.msra.mxu0 0.0
      %626 = vmatprep.subr.mxu0 0.0
      %627 = vmatpush1.msra.mxu0 0.0
      %628 = vmatprep.subr.mxu0 0.0
      %629 = vmatpush1.msra.mxu0 0.0
      %630 = vmatprep.subr.mxu0 0.0
      %631 = vmatpush1.msra.mxu0 0.0
      %632 = vmatprep.subr.mxu0 0.0
      %633 = vmatpush1.msra.mxu0 0.0
      %634 = vmatprep.subr.mxu0 0.0
      %635 = vmatpush1.msra.mxu0 0.0
      %636 = vmatprep.subr.mxu0 0.0
      %637 = vmatpush1.msra.mxu0 0.0
      %638 = vmatprep.subr.mxu0 0.0
      %639 = vmatpush1.msra.mxu0 0.0
      %640 = vmatprep.subr.mxu0 0.0
      %641 = vmatpush1.msra.mxu0 0.0
      %642 = vmatprep.subr.mxu0 0.0
      %643 = vmatpush1.msra.mxu0 0.0
      %644 = vmatprep.subr.mxu0 0.0
      %645 = vmatpush1.msra.mxu0 0.0
      %646 = vmatprep.subr.mxu0 0.0
      %647 = vmatpush1.msra.mxu0 0.0
      %648 = vmatprep.subr.mxu0 0.0
      %649 = vmatpush1.msra.mxu0 0.0
      %650 = vmatprep.subr.mxu0 0.0
      %651 = vmatpush1.msra.mxu0 0.0
      %652 = vmatprep.subr.mxu0 0.0
      %653 = vmatpush1.msra.mxu0 0.0
      %654 = vmatprep.subr.mxu0 0.0
      %655 = vmatpush1.msra.mxu0 0.0
      %656 = vmatprep.subr.mxu0 0.0
      %657 = vmatpush1.msra.mxu0 0.0
      %658 = vmatprep.subr.mxu0 0.0
      %659 = vmatpush1.msra.mxu0 0.0
      %660 = vmatprep.subr.mxu0 0.0
      %661 = vmatpush1.msra.mxu0 0.0
      %662 = vmatprep.subr.mxu0 0.0
      %663 = vmatpush1.msra.mxu0 0.0
      %664 = vmatprep.subr.mxu0 0.0
      %665 = vmatpush1.msra.mxu0 0.0
      %666 = vmatprep.subr.mxu0 0.0
      %667 = vmatpush1.msra.mxu0 0.0
      %668 = vmatprep.subr.mxu0 0.0
      %669 = vmatpush1.msra.mxu0 0.0
      %670 = vmatprep.subr.mxu0 0.0
      %671 = vmatpush1.msra.mxu0 0.0
      %672 = vmatprep.subr.mxu0 0.0
      %673 = vmatpush1.msra.mxu0 0.0
      %674 = vmatprep.subr.mxu0 0.0
      %675 = vmatpush1.msra.mxu0 0.0
      %676 = vmatprep.subr.mxu0 0.0
      %677 = vmatpush1.msra.mxu0 0.0
      %678 = vmatprep.subr.mxu0 0.0
      %679 = vmatpush1.msra.mxu0 0.0
      %680 = vmatprep.mubr.f32.mxu0 0.0
      %681 = vmatmul.mubr.f32.gmra.mrb[0].mxu0 %v609
      %v682 = vpop.f32.mrb[0].mxu0
      %v683 = vadd.f32 0.0, %v682
      %v684 = vpop.f32.mrb[0].mxu0
      %685 = vmatprep.mubr.f32.mxu0 0.0
      %686 = vmatmul.mubr.f32.gmra.mrb[0].mxu0 %v612
      %v687 = vpop.f32.mrb[0].mxu0
      %v688 = vadd.f32 0.0, %v687
      %v689 = vpop.f32.mrb[0].mxu0
      %690 = vdwg.mxu0
      %v691 = vmax.f32 %v683, 0.0
      %v692 = vmax.f32 %v688, 0.0
      %v693 = vld [vmem:[%s211] sm:$0xff]
      %v694 = vld [vmem:[%s211 + $0x8] sm:$0x3]
      %695 = vset.pattern.permute.xlu0 1
      %696 = vperm.xlu0 %695, %v693
      %v697 = vpop.permute.xlu0 %696
      %698 = vset.pattern.permute.xlu0 1
      %699 = vperm.xlu0 %698, %v694
      %v700 = vpop.permute.xlu0 %699
      %vm701 = vcmp.eq.s32.totalorder %v275, %v697
      %vm702 = vcmp.eq.s32.totalorder %v275, %v700
      %v703 = vsel %vm701, 1, 0
      %v704 = vsel %vm702, 1, 0
      %v705 = vcvt.s32.f32 %v703
      %v706 = vcvt.s32.f32 %v704
      %vm707 = vcmask 15360
      %v708 = vsel %vm707, %v705, 0.0
      %vm709 = vcmask 9216
      %v710 = vsel %vm709, %v706, 0.0
      %v711 = vadd.f32 %v708, %v710
      %v712 = vrot.slane %v711, 4
      %v713 = vadd.f32 %v711, %v712
      %v714 = vrot.slane %v713, 2
      %v715 = vadd.f32 %v713, %v714
      %v716 = vrot.slane %v715, 1
      %v717 = vadd.f32 %v715, %v716
      %v718 = vmax.f32 %v717, 1.0
      %v719 = vrcp.pop %v718
      %v720 = vmul.f32 %v705, %v719
      %v721 = vmul.f32 %v706, %v719
      %722 = vxpose.xlu0.b32.start [1/16] %v720, 128
      %723 = vxpose.xlu0.b32.cont [2/16] %v721, 128
      %724 = vxpose.xlu0.b32.cont [3/16] 0.0, 128
      %725 = vxpose.xlu0.b32.cont [4/16] 0.0, 128
      %726 = vxpose.xlu0.b32.cont [5/16] 0.0, 128
      %727 = vxpose.xlu0.b32.cont [6/16] 0.0, 128
      %728 = vxpose.xlu0.b32.cont [7/16] 0.0, 128
      %729 = vxpose.xlu0.b32.cont [8/16] 0.0, 128
      %730 = vxpose.xlu0.b32.cont [9/16] 0.0, 128
      %731 = vxpose.xlu0.b32.cont [10/16] 0.0, 128
      %732 = vxpose.xlu0.b32.cont [11/16] 0.0, 128
      %733 = vxpose.xlu0.b32.cont [12/16] 0.0, 128
      %734 = vxpose.xlu0.b32.cont [13/16] 0.0, 128
      %735 = vxpose.xlu0.b32.cont [14/16] 0.0, 128
      %736 = vxpose.xlu0.b32.cont [15/16] 0.0, 128
      %737 = vxpose.xlu0.b32.end [16/16] 0.0, 128
      %v738 = vpop.trf.xlu0
      %v739 = vpop.trf.xlu0
      %v740 = vpop.trf.xlu0
      %v741 = vpop.trf.xlu0
      %v742 = vpop.trf.xlu0
      %v743 = vpop.trf.xlu0
      %v744 = vpop.trf.xlu0
      %v745 = vpop.trf.xlu0
      %v746 = vpop.trf.xlu0
      %v747 = vpop.trf.xlu0
      %v748 = vpop.trf.xlu0
      %v749 = vpop.trf.xlu0
      %v750 = vpop.trf.xlu0
      %v751 = vpop.trf.xlu0
      %v752 = vpop.trf.xlu0
      %v753 = vpop.trf.xlu0
      %v755 = vsel %vm325, %v738, 0
      %v758 = vsel %vm347, %v692, 0
      %760 = vmatprep.subr.mxu0 0.0
      %761 = vmatpush1.msra.mxu0 %v691
      %762 = vmatprep.subr.mxu0 0.0
      %763 = vmatpush1.msra.mxu0 %v758
      %764 = vmatprep.subr.mxu0 0.0
      %765 = vmatpush1.msra.mxu0 0.0
      %766 = vmatprep.subr.mxu0 0.0
      %767 = vmatpush1.msra.mxu0 0.0
      %768 = vmatprep.subr.mxu0 0.0
      %769 = vmatpush1.msra.mxu0 0.0
      %770 = vmatprep.subr.mxu0 0.0
      %771 = vmatpush1.msra.mxu0 0.0
      %772 = vmatprep.subr.mxu0 0.0
      %773 = vmatpush1.msra.mxu0 0.0
      %774 = vmatprep.subr.mxu0 0.0
      %775 = vmatpush1.msra.mxu0 0.0
      %776 = vmatprep.subr.mxu0 0.0
      %777 = vmatpush1.msra.mxu0 0.0
      %778 = vmatprep.subr.mxu0 0.0
      %779 = vmatpush1.msra.mxu0 0.0
      %780 = vmatprep.subr.mxu0 0.0
      %781 = vmatpush1.msra.mxu0 0.0
      %782 = vmatprep.subr.mxu0 0.0
      %783 = vmatpush1.msra.mxu0 0.0
      %784 = vmatprep.subr.mxu0 0.0
      %785 = vmatpush1.msra.mxu0 0.0
      %786 = vmatprep.subr.mxu0 0.0
      %787 = vmatpush1.msra.mxu0 0.0
      %788 = vmatprep.subr.mxu0 0.0
      %789 = vmatpush1.msra.mxu0 0.0
      %790 = vmatprep.subr.mxu0 0.0
      %791 = vmatpush1.msra.mxu0 0.0
      %792 = vmatprep.subr.mxu0 0.0
      %793 = vmatpush1.msra.mxu0 0.0
      %794 = vmatprep.subr.mxu0 0.0
      %795 = vmatpush1.msra.mxu0 0.0
      %796 = vmatprep.subr.mxu0 0.0
      %797 = vmatpush1.msra.mxu0 0.0
      %798 = vmatprep.subr.mxu0 0.0
      %799 = vmatpush1.msra.mxu0 0.0
      %800 = vmatprep.subr.mxu0 0.0
      %801 = vmatpush1.msra.mxu0 0.0
      %802 = vmatprep.subr.mxu0 0.0
      %803 = vmatpush1.msra.mxu0 0.0
      %804 = vmatprep.subr.mxu0 0.0
      %805 = vmatpush1.msra.mxu0 0.0
      %806 = vmatprep.subr.mxu0 0.0
      %807 = vmatpush1.msra.mxu0 0.0
      %808 = vmatprep.subr.mxu0 0.0
      %809 = vmatpush1.msra.mxu0 0.0
      %810 = vmatprep.subr.mxu0 0.0
      %811 = vmatpush1.msra.mxu0 0.0
      %812 = vmatprep.subr.mxu0 0.0
      %813 = vmatpush1.msra.mxu0 0.0
      %814 = vmatprep.subr.mxu0 0.0
      %815 = vmatpush1.msra.mxu0 0.0
      %816 = vmatprep.subr.mxu0 0.0
      %817 = vmatpush1.msra.mxu0 0.0
      %818 = vmatprep.subr.mxu0 0.0
      %819 = vmatpush1.msra.mxu0 0.0
      %820 = vmatprep.subr.mxu0 0.0
      %821 = vmatpush1.msra.mxu0 0.0
      %822 = vmatprep.subr.mxu0 0.0
      %823 = vmatpush1.msra.mxu0 0.0
      %824 = vmatprep.mubr.f32.mxu0 0.0
      %825 = vmatmul.mubr.f32.gmra.mrb[0].mxu0 %v755
      %v826 = vpop.f32.mrb[0].mxu0
      %v827 = vadd.f32 0.0, %v826
      %v828 = vpop.f32.mrb[0].mxu0
      %829 = vdwg.mxu0
      %v830 = vld [vmem:[%s3] sm:$0xff]
      %v831 = vld [vmem:[%s3 + $0x8] sm:$0x3]
      %v832 = vld [vmem:[%s3 + $0xa] sm:$0x1]
      %v833 = vlaneseq
      %v834 = vshrl.u32 %v833, 7
      %v835 = vsub.s32 0, %v834
      %v836 = vrot.slane %v832, %v835
      %v838 = vsel %vm325, %v827, 0
      %v841 = vsel %vm347, %v831, 0
      %843 = vmatprep.subr.mxu0 0.0
      %844 = vmatpush1.msra.mxu0 %v830
      %845 = vmatprep.subr.mxu0 0.0
      %846 = vmatpush1.msra.mxu0 %v841
      %847 = vmatprep.subr.mxu0 0.0
      %848 = vmatpush1.msra.mxu0 0.0
      %849 = vmatprep.subr.mxu0 0.0
      %850 = vmatpush1.msra.mxu0 0.0
      %851 = vmatprep.subr.mxu0 0.0
      %852 = vmatpush1.msra.mxu0 0.0
      %853 = vmatprep.subr.mxu0 0.0
      %854 = vmatpush1.msra.mxu0 0.0
      %855 = vmatprep.subr.mxu0 0.0
      %856 = vmatpush1.msra.mxu0 0.0
      %857 = vmatprep.subr.mxu0 0.0
      %858 = vmatpush1.msra.mxu0 0.0
      %859 = vmatprep.subr.mxu0 0.0
      %860 = vmatpush1.msra.mxu0 0.0
      %861 = vmatprep.subr.mxu0 0.0
      %862 = vmatpush1.msra.mxu0 0.0
      %863 = vmatprep.subr.mxu0 0.0
      %864 = vmatpush1.msra.mxu0 0.0
      %865 = vmatprep.subr.mxu0 0.0
      %866 = vmatpush1.msra.mxu0 0.0
      %867 = vmatprep.subr.mxu0 0.0
      %868 = vmatpush1.msra.mxu0 0.0
      %869 = vmatprep.subr.mxu0 0.0
      %870 = vmatpush1.msra.mxu0 0.0
      %871 = vmatprep.subr.mxu0 0.0
      %872 = vmatpush1.msra.mxu0 0.0
      %873 = vmatprep.subr.mxu0 0.0
      %874 = vmatpush1.msra.mxu0 0.0
      %875 = vmatprep.subr.mxu0 0.0
      %876 = vmatpush1.msra.mxu0 0.0
      %877 = vmatprep.subr.mxu0 0.0
      %878 = vmatpush1.msra.mxu0 0.0
      %879 = vmatprep.subr.mxu0 0.0
      %880 = vmatpush1.msra.mxu0 0.0
      %881 = vmatprep.subr.mxu0 0.0
      %882 = vmatpush1.msra.mxu0 0.0
      %883 = vmatprep.subr.mxu0 0.0
      %884 = vmatpush1.msra.mxu0 0.0
      %885 = vmatprep.subr.mxu0 0.0
      %886 = vmatpush1.msra.mxu0 0.0
      %887 = vmatprep.subr.mxu0 0.0
      %888 = vmatpush1.msra.mxu0 0.0
      %889 = vmatprep.subr.mxu0 0.0
      %890 = vmatpush1.msra.mxu0 0.0
      %891 = vmatprep.subr.mxu0 0.0
      %892 = vmatpush1.msra.mxu0 0.0
      %893 = vmatprep.subr.mxu0 0.0
      %894 = vmatpush1.msra.mxu0 0.0
      %895 = vmatprep.subr.mxu0 0.0
      %896 = vmatpush1.msra.mxu0 0.0
      %897 = vmatprep.subr.mxu0 0.0
      %898 = vmatpush1.msra.mxu0 0.0
      %899 = vmatprep.subr.mxu0 0.0
      %900 = vmatpush1.msra.mxu0 0.0
      %901 = vmatprep.subr.mxu0 0.0
      %902 = vmatpush1.msra.mxu0 0.0
      %903 = vmatprep.subr.mxu0 0.0
      %904 = vmatpush1.msra.mxu0 0.0
      %905 = vmatprep.subr.mxu0 0.0
      %906 = vmatpush1.msra.mxu0 0.0
      %907 = vmatprep.mubr.f32.mxu0 0.0
      %908 = vmatmul.mubr.f32.gmra.mrb[0].mxu0 %v838
      %v909 = vpop.f32.mrb[0].mxu0
      %v910 = vadd.f32 %v836, %v909
      %v911 = vpop.f32.mrb[0].mxu0
      %912 = vdwg.mxu0
      %913 = vst [vmem:[%s215] sm:$0x3] %v910
      %p914 = scmp.lt.s32.totalorder %s15, 3
      %s915 = scalar_select %p914, %s15, 3
      %s916 = smul.addr %s915, 2
      %s917 = scalar_lea.vmem %s4, %s916
      // Predicated region
      $region37: #{gat_graph_classifier.1} parent=35 // pred_check
        %p918 = pneg %p127
      $region38: #{gat_graph_classifier.1} parent=35 // pred_check_branch
        %920 = sbr.rel (%p918) target = $region40
      $region39: #{gat_graph_classifier.1} parent=35 // pred_region
        _
      $region40: #{gat_graph_classifier.1} parent=35 // pred_fallthru
        _
    $region36: #{gat_graph_classifier.1} parent=5 // pred_fallthru
      _
    %p921 = scmp.le.s32.totalorder 2, %s10
    // Predicated region
    $region41: #{gat_graph_classifier.1} parent=5 // pred_check
      %p922 = pneg %p921
    $region42: #{gat_graph_classifier.1} parent=5 // pred_check_branch
      %924 = sbr.rel (%p922) target = $region44
    $region43: #{gat_graph_classifier.1} parent=5 // pred_region
      %s925 = ssub.s32 %s10, 2
      // Predicated region
      $region45: #{gat_graph_classifier.1} parent=43 // pred_check
        %p926 = pneg %p133
      $region46: #{gat_graph_classifier.1} parent=43 // pred_check_branch
        %928 = sbr.rel (%p926) target = $region48
      $region47: #{gat_graph_classifier.1} parent=43 // pred_region
        %p929 = scmp.lt.s32.totalorder %s16, 3
        %s930 = scalar_select %p929, %s16, 3
        %s931 = smul.addr %s930, 2
        %s932 = scalar_lea.vmem %s4, %s931
      $region48: #{gat_graph_classifier.1} parent=43 // pred_fallthru
        _
    $region44: #{gat_graph_classifier.1} parent=5 // pred_fallthru
      _
  $region6: #{gat_graph_classifier.1} parent=0 // loop_footer
    %s14 = sadd.s32 1, %s10
  $region7: #{gat_graph_classifier.1} parent=0 // loop_footer_branch
    %9 = sbr.rel target = $region3
  $region8: #{gat_graph_classifier.1} parent=0 // loop_exit
    _

</llo_original>
